<compile_context>
chip_gen: v7x
topology: tpu7x:2x2x1
jax: 0.10.0
libtpu: 0.0.40
codegen_flags: <defaults>
</compile_context>

<pallas_src>
import functools

import jax
import jax.numpy as jnp
from jax.experimental import pallas as pl
from jax.experimental.pallas import tpu as pltpu

LANES = 128
ROW_ALIGN = 16                        # rows per 2048-element chunk (16 x 128)
TARGET_BLOCK_BYTES = 4 * 1024 * 1024  # ~4 MiB per input block
VMEM_LIMIT_BYTES = 40 * 1024 * 1024   # headroom over 2 in x 2 buf x 4 MiB


def _num_tensorcores():
    """Best-effort TensorCore count per chip: 2 on v7x, else 1 (v5e/v6e)."""
    try:
        kind = jax.devices()[0].device_kind.lower()
    except Exception:
        return 1
    return 2 if ("v7" in kind or "7x" in kind) else 1


def _mse_partial_kernel(pred_ref, tgt_ref, out_ref):
    """Accumulates per-(sublane, lane) partial sums of (pred - target)^2.

    Grid is (num_par, inner).  The (1, 8, LANES) output block is indexed only
    by the parallel axis, so it stays resident in VMEM across the inner
    ("arbitrary") streaming-reduction axis and acts as the accumulator.
    """
    i = pl.program_id(1)

    @pl.when(i == 0)
    def _init():
        out_ref[...] = jnp.zeros_like(out_ref)

    # Widen to f32 on the VPU (inputs stream in native dtype, e.g. bf16).
    d = pred_ref[...].astype(jnp.float32) - tgt_ref[...].astype(jnp.float32)
    sq = d * d
    # Pure VPU accumulation into a full-vreg (8, LANES) accumulator: reduce
    # only across vregs (leading axis), no cross-sublane/lane XLU work here.
    out_ref[...] += jnp.sum(sq.reshape(-1, 8, LANES), axis=0)


def _mse_sum_pallas(pred2d, tgt2d, num_par, inner, tile_rows):
    """Sum((pred - tgt)^2) over a (num_par * inner * tile_rows, LANES) slab."""
    outer_sem = pltpu.CORE_PARALLEL if num_par > 1 else pltpu.ARBITRARY
    partials = pl.pallas_call(
        _mse_partial_kernel,
        out_shape=jax.ShapeDtypeStruct((num_par, 8, LANES), jnp.float32),
        grid_spec=pltpu.PrefetchScalarGridSpec(
            num_scalar_prefetch=0,
            grid=(num_par, inner),
            in_specs=[
                pl.BlockSpec((tile_rows, LANES),
                             lambda c, i: (c * inner + i, 0)),
                pl.BlockSpec((tile_rows, LANES),
                             lambda c, i: (c * inner + i, 0)),
            ],
            out_specs=pl.BlockSpec((1, 8, LANES), lambda c, i: (c, 0, 0)),
        ),
        compiler_params=pltpu.CompilerParams(
            # Outer axis shards across TensorCores on v7x; inner axis is the
            # sequential streaming reduction over the resident accumulator.
            dimension_semantics=(outer_sem, pltpu.ARBITRARY),
            vmem_limit_bytes=VMEM_LIMIT_BYTES,
        ),
    )(pred2d, tgt2d)
    # Final tiny cross-sublane/lane reduction (num_par * 8 * 128 f32) in JAX.
    return jnp.sum(partials)


def _sum_squared_error(pred, target):
    """Returns (sum((pred - target)^2) as f32 scalar, true element count)."""
    assert pred.shape == target.shape, (pred.shape, target.shape)
    p = pred.reshape(-1)
    t = target.reshape(-1)
    total = p.shape[0]

    chunk = ROW_ALIGN * LANES                   # 2048 elements
    rows = (total // chunk) * ROW_ALIGN         # bulk rows, multiple of 16
    sq_sum = jnp.float32(0.0)

    bulk = 0
    if rows > 0:
        itemsize = max(jnp.dtype(p.dtype).itemsize, jnp.dtype(t.dtype).itemsize)
        # Sublane packing: 2-byte dtypes pack (16, 128) per vreg.
        sub = 16 if itemsize < 4 else 8
        # ~4 MiB per input block (8192 rows f32, 16384 rows bf16).
        max_rows = max(sub, TARGET_BLOCK_BYTES // (LANES * itemsize))

        num_par = _num_tensorcores()
        if rows < num_par * sub:
            num_par = 1
        # Tile count is a multiple of num_par; tile_rows adapts to the data so
        # the un-pipelined remainder is at most a few hundred rows.
        n_tiles = num_par * pl.cdiv(rows, num_par * max_rows)
        tile_rows = ((rows // n_tiles) // sub) * sub
        inner = n_tiles // num_par
        bulk_rows = n_tiles * tile_rows
        bulk = bulk_rows * LANES

        p2 = p[:bulk].reshape(bulk_rows, LANES)
        t2 = t[:bulk].reshape(bulk_rows, LANES)
        sq_sum = sq_sum + _mse_sum_pallas(p2, t2, num_par, inner, tile_rows)

    if bulk < total:
        # Remainder (sub-tile rows + lane tail, <0.2% of traffic): tiny fused
        # reduce in XLA, avoids any padding copy of the full inputs.
        dr = p[bulk:].astype(jnp.float32) - t[bulk:].astype(jnp.float32)
        sq_sum = sq_sum + jnp.sum(dr * dr)

    return sq_sum, total


@functools.partial(jax.jit, static_argnames=("loss_weight",))
def _mse_loss(pred, target, loss_weight=1.0):
    sq_sum, n = _sum_squared_error(pred, target)
    # F.mse_loss default: mean over all elements.
    return jnp.float32(loss_weight) * (sq_sum / jnp.float32(n))


class MSELoss:
    """Pallas re-implementation of mmseg MSELoss (forward only)."""

    def __init__(self, reduction='mean', class_weight=None, loss_weight=1.0,
                 loss_name='loss_mse'):
        # `reduction` / `class_weight` are kept for signature parity only; the
        # reference forward path (mean_square_error -> F.mse_loss default)
        # always takes the mean over all elements.
        self.reduction = reduction
        self.loss_weight = loss_weight
        self.class_weight = class_weight
        self._loss_name = loss_name

    def __call__(self, cls_score, label, weight=None, avg_factor=None,
                 reduction_override=None, **kwargs):
        assert reduction_override in (None, 'none', 'mean', 'sum')
        # TODO(synk): `weight`/`avg_factor`/`reduction_override` are ignored,
        # matching the reference forward which never forwards them to
        # mean_square_error (F.mse_loss always runs with default 'mean').
        return _mse_loss(cls_score, label, loss_weight=float(self.loss_weight))

    forward = __call__

    @property
    def loss_name(self):
        return self._loss_name


if __name__ == "__main__":
    key = jax.random.PRNGKey(0)
    loss_mod = MSELoss(loss_weight=1.0)

    # 1) Primary small NCHW example: exact single-tile kernel path.
    k1, k2 = jax.random.split(key)
    pred = jax.random.normal(k1, (2, 4, 16, 16), dtype=jnp.float32)
    target = jax.random.normal(k2, (2, 4, 16, 16), dtype=jnp.float32)
    loss = jax.block_until_ready(loss_mod(pred, target))
    ref = jnp.mean((pred - target) ** 2)
    assert jnp.allclose(loss, ref, rtol=1e-6, atol=1e-6), (loss, ref)

    # 2) Larger input: exercises multi-step inner accumulation with the
    #    adaptive (cdiv-derived) tile size.
    k3, k4 = jax.random.split(k1)
    p2 = jax.random.normal(k3, (2, 4, 384, 384), dtype=jnp.float32)
    t2 = jax.random.normal(k4, (2, 4, 384, 384), dtype=jnp.float32)
    l2 = jax.block_until_ready(loss_mod(p2, t2))
    r2 = jnp.mean((p2 - t2) ** 2)
    assert jnp.allclose(l2, r2, rtol=1e-4, atol=1e-6), (l2, r2)

    # 3) bf16 inputs streamed natively + odd size (XLA tail path).
    k5, k6 = jax.random.split(k2)
    p3 = jax.random.normal(k5, (3, 5, 33, 33), dtype=jnp.bfloat16)
    t3 = jax.random.normal(k6, (3, 5, 33, 33), dtype=jnp.bfloat16)
    l3 = jax.block_until_ready(loss_mod(p3, t3))
    r3 = jnp.mean((p3.astype(jnp.float32) - t3.astype(jnp.float32)) ** 2)
    assert jnp.allclose(l3, r3, rtol=1e-5, atol=1e-6), (l3, r3)

    print("KERNEL_OK")
</pallas_src>

<mosaic_0001>
module attributes {stable_mosaic.version = 11 : i64} {
  func.func @_mse_partial_kernel(%arg0: i32, %arg1: i32, %arg2: memref<16x128xf32, #tpu.memory_space<vmem>>, %arg3: memref<16x128xf32, #tpu.memory_space<vmem>>, %arg4: memref<1x8x128xf32, #tpu.memory_space<vmem>>) attributes {dimension_semantics = [#tpu.dimension_semantics<arbitrary>, #tpu.dimension_semantics<arbitrary>], iteration_bounds = array<i64: 1, 1>, scalar_prefetch = 0 : i64, scratch_operands = 0 : i64, tpu.core_type = #tpu.core_type<tc>, window_params = [{transform_indices = @transform_0, window_bounds = array<i64: 16, 128>}, {transform_indices = @transform_1, window_bounds = array<i64: 16, 128>}, {transform_indices = @transform_2, window_bounds = array<i64: 1, 8, 128>}]} {
    %c0_i32 = arith.constant 0 : i32
    %0 = arith.cmpi eq, %arg1, %c0_i32 : i32
    %1 = arith.extui %0 : i1 to i32
    %c0_i32_0 = arith.constant 0 : i32
    %2 = arith.cmpi ne, %1, %c0_i32_0 : i32
    scf.if %2 {
      %cst_10 = arith.constant 0.000000e+00 : f32
      %13 = vector.broadcast %cst_10 : f32 to vector<1x8x128xf32>
      %c0_11 = arith.constant 0 : index
      %c0_12 = arith.constant 0 : index
      %c0_13 = arith.constant 0 : index
      %14 = vector.load %arg4[%c0_11, %c0_12, %c0_13] : memref<1x8x128xf32, #tpu.memory_space<vmem>>, vector<1x8x128xf32>
      tpu.vector_store %arg4[%c0_11, %c0_12, %c0_13], %13 {strides = array<i32>} : memref<1x8x128xf32, #tpu.memory_space<vmem>>, vector<1x8x128xf32>,
    } else {
    }
    %c0 = arith.constant 0 : index
    %c0_1 = arith.constant 0 : index
    %3 = vector.load %arg2[%c0, %c0_1] : memref<16x128xf32, #tpu.memory_space<vmem>>, vector<16x128xf32>
    %c0_2 = arith.constant 0 : index
    %c0_3 = arith.constant 0 : index
    %4 = vector.load %arg3[%c0_2, %c0_3] : memref<16x128xf32, #tpu.memory_space<vmem>>, vector<16x128xf32>
    %5 = arith.subf %3, %4 : vector<16x128xf32>
    %6 = arith.mulf %5, %5 : vector<16x128xf32>
    %c0_4 = arith.constant 0 : index
    %c0_5 = arith.constant 0 : index
    %c0_6 = arith.constant 0 : index
    %7 = vector.load %arg4[%c0_4, %c0_5, %c0_6] : memref<1x8x128xf32, #tpu.memory_space<vmem>>, vector<1x8x128xf32>
    %8 = vector.shape_cast %6 : vector<16x128xf32> to vector<2x8x128xf32>
    %cst = arith.constant dense<0.000000e+00> : vector<8x128xf32>
    %9 = vector.multi_reduction <add>, %8, %cst [0] : vector<2x8x128xf32> to vector<8x128xf32>
    %10 = vector.shape_cast %9 : vector<8x128xf32> to vector<1x8x128xf32>
    %11 = arith.addf %7, %10 : vector<1x8x128xf32>
    %c0_7 = arith.constant 0 : index
    %c0_8 = arith.constant 0 : index
    %c0_9 = arith.constant 0 : index
    %12 = vector.load %arg4[%c0_7, %c0_8, %c0_9] : memref<1x8x128xf32, #tpu.memory_space<vmem>>, vector<1x8x128xf32>
    tpu.vector_store %arg4[%c0_7, %c0_8, %c0_9], %11 {strides = array<i32>} : memref<1x8x128xf32, #tpu.memory_space<vmem>>, vector<1x8x128xf32>,
    return
  }
  func.func @transform_0(%arg0: i32, %arg1: i32) -> (i32, i32) {
    %c1_i32 = arith.constant 1 : i32
    %0 = arith.muli %arg0, %c1_i32 : i32
    %1 = arith.addi %0, %arg1 : i32
    %c0_i32 = arith.constant 0 : i32
    %c0_i32_0 = arith.constant 0 : i32
    return %1, %c0_i32 : i32, i32
  }
  func.func @transform_1(%arg0: i32, %arg1: i32) -> (i32, i32) {
    %c1_i32 = arith.constant 1 : i32
    %0 = arith.muli %arg0, %c1_i32 : i32
    %1 = arith.addi %0, %arg1 : i32
    %c0_i32 = arith.constant 0 : i32
    %c0_i32_0 = arith.constant 0 : i32
    return %1, %c0_i32 : i32, i32
  }
  func.func @transform_2(%arg0: i32, %arg1: i32) -> (i32, i32, i32) {
    %c0_i32 = arith.constant 0 : i32
    %c0_i32_0 = arith.constant 0 : i32
    %c0_i32_1 = arith.constant 0 : i32
    return %arg0, %c0_i32, %c0_i32_0 : i32, i32, i32
  }
}

</mosaic_0001>

<llo_original>
// kernel: _mse_loss.1
$region0: #{_mse_loss.1}
  #allocation0 [shape = 'u32[]', space=smem, size = 0x4, offset = 0x4, fixed_abs, tag = 'smem constant byte address 0x4 - core index']
  #allocation1 [shape = 'u32[144,128]{1,0:T(1,128)}', space=vmem, size = 0x12000, scoped, tag = 'internal scratch']
  %s0 = inlined_call_operand.vmem [shape: f32[16,128], index: 0, kind: input, shape index: {}]
  %s1 = inlined_call_operand.vmem [shape: f32[16,128], index: 1, kind: input, shape index: {}]
  %s2 = inlined_call_operand.vmem [shape: f32[1,8,128], index: 2, kind: output, shape index: {}]
  %s3 = sld [smem:[#allocation0]]
  $region22: #{_mse_loss.1} parent=0
    _
  %s5 = ssub.s32 1, %s3
  %s6 = scalar_select 0, %s5, %s3
  // Predicated region
  $region2: #{_mse_loss.1} parent=0 // pred_check
    _
  $region3: #{_mse_loss.1} parent=0 // pred_check_branch
    %8 = sbr.rel (0) target = $region5
  $region4: #{_mse_loss.1} parent=0 // pred_region
    %s9 = sadd.s32 0, 0
    %s10 = smul.u32 2, %s9
    %p11 = scmp.lt.s32.totalorder %s10, 1
    %s12 = scalar_select %p11, %s10, 1
    %s13 = smul.addr %s12, 8
    %s14 = scalar_lea.vmem %s0, %s13
    %s15 = sadd.s32 0, 0
    %s16 = smul.u32 2, %s15
  $region5: #{_mse_loss.1} parent=0 // pred_fallthru
    _
  // Predicated region
  $region6: #{_mse_loss.1} parent=0 // pred_check
    _
  $region7: #{_mse_loss.1} parent=0 // pred_check_branch
    %18 = sbr.rel (0) target = $region9
  $region8: #{_mse_loss.1} parent=0 // pred_region
    %s19 = sadd.s32 0, 0
    %s20 = smul.u32 2, %s19
    %p21 = scmp.lt.s32.totalorder %s20, 1
    %s22 = scalar_select %p21, %s20, 1
    %s23 = smul.addr %s22, 8
    %s24 = scalar_lea.vmem %s1, %s23
    %s25 = sadd.s32 0, 0
    %s26 = smul.u32 2, %s25
  $region9: #{_mse_loss.1} parent=0 // pred_fallthru
    _
  %s27 = sadd.s32 0, 0
  %s28 = smul.u32 2, %s27
  %p29 = scmp.lt.s32.totalorder %s28, 1
  %s30 = scalar_select %p29, %s28, 1
  %s31 = smul.addr %s30, 8
  %s32 = scalar_lea.vmem %s0, %s31
  %s33 = sadd.s32 0, 0
  %s34 = smul.u32 2, %s33
  %p35 = scmp.lt.s32.totalorder %s34, 1
  %s36 = scalar_select %p35, %s34, 1
  %s37 = smul.addr %s36, 8
  %s38 = scalar_lea.vmem %s1, %s37
  %s39 = sadd.s32 0, 0
  %s40 = smul.u32 2, %s39
  %p41 = scmp.lt.s32.totalorder %s40, 1
  %s42 = scalar_select %p41, %s40, 1
  %s43 = smul.addr %s42, 8
  %s44 = scalar_lea.vmem %s0, %s43
  %s45 = sadd.s32 0, 0
  %s46 = smul.u32 2, %s45
  %s47 = sadd.s32 0, 0
  %s48 = smul.u32 2, %s47
  %p49 = scmp.lt.s32.totalorder %s48, 1
  %s50 = scalar_select %p49, %s48, 1
  %s51 = smul.addr %s50, 8
  %s52 = scalar_lea.vmem %s1, %s51
  %s53 = sadd.s32 0, 0
  %s54 = smul.u32 2, %s53
  %p55 = scmp.eq.s32.totalorder 0, 0
  // Predicated region
  $region10: #{_mse_loss.1} parent=0 // pred_check
    %p56 = pneg %p55
  $region11: #{_mse_loss.1} parent=0 // pred_check_branch
    %58 = sbr.rel (%p56) target = $region13
  $region12: #{_mse_loss.1} parent=0 // pred_region
    %59 = vst [vmem:[%s2] sm:$0xff] 0.0
  $region13: #{_mse_loss.1} parent=0 // pred_fallthru
    _
  %v60 = vld [vmem:[%s44] sm:$0xff]
  %v61 = vld [vmem:[%s44 + $0x8] sm:$0xff]
  %v62 = vld [vmem:[%s52] sm:$0xff]
  %v63 = vld [vmem:[%s52 + $0x8] sm:$0xff]
  %v64 = vsub.f32 %v60, %v62
  %v65 = vsub.f32 %v61, %v63
  %v66 = vmul.f32 %v64, %v64
  %v67 = vmul.f32 %v65, %v65
  %v68 = vld [vmem:[%s2] sm:$0xff]
  %v69 = vadd.f32 %v66, %v67
  %v70 = vadd.f32 %v68, %v69
  %71 = vst [vmem:[%s2] sm:$0xff] %v70
  // Predicated region
  $region14: #{_mse_loss.1} parent=0 // pred_check
    _
  $region15: #{_mse_loss.1} parent=0 // pred_check_branch
    %73 = sbr.rel (0) target = $region17
  $region16: #{_mse_loss.1} parent=0 // pred_region
    _
  $region17: #{_mse_loss.1} parent=0 // pred_fallthru
    _
  // Predicated region
  $region18: #{_mse_loss.1} parent=0 // pred_check
    _
  $region19: #{_mse_loss.1} parent=0 // pred_check_branch
    %75 = sbr.rel (0) target = $region21
  $region20: #{_mse_loss.1} parent=0 // pred_region
    _
  $region21: #{_mse_loss.1} parent=0 // pred_fallthru
    _

</llo_original>
